<compile_context>
chip_gen: v5e
topology: v5e:2x2
jax: 0.10.0
libtpu: 0.0.40
codegen_flags: <defaults>
</compile_context>

<pallas_src>
import jax
import jax.numpy as jnp
from jax.experimental import pallas as pl
from jax.experimental.pallas import tpu as pltpu


def ffn_kernel(x_ref, w1_ref, b1_ref, w2_ref, b2_ref, o_ref):
    # x_ref : (in_ch, tm)     -- batch on lanes (128-lane dense)
    # w1_ref: (hidden, in_ch) -- native PyTorch [out, in] layout, resident
    # b1_ref: (hidden, 1)
    # w2_ref: (out_ch, hidden)
    # b2_ref: (out_ch, 1)
    # o_ref : (out_ch, tm)    -- lane-dense output tile (unmasked stores except
    #                            the final partial block, which Pallas masks)
    h = jnp.dot(w1_ref[...], x_ref[...], preferred_element_type=jnp.float32)
    h = h + b1_ref[...]          # broadcast (hidden, 1) along the lane axis
    h = jnp.tanh(h)              # EUP; stays f32
    # dropout(p=0.1) in eval mode == identity
    y = jnp.dot(w2_ref[...], h, preferred_element_type=jnp.float32)
    y = y + b2_ref[...]
    o_ref[...] = y.astype(o_ref.dtype)


def _pick_tm(n):
    """Batch (lane-axis) tile width.

    Heuristic: prefer a grid of ~2 steps (keeps both v7x TensorCores busy via
    the "parallel" grid axis; on 1-TC chips it is just 2 cheap serial steps),
    cap at 4096 lanes (per-step VMEM stays well under 1 MiB even
    double-buffered), floor at the 128-lane vreg width.
    """
    half = pl.cdiv(n, 2)
    tm = 128 * pl.cdiv(half, 128)
    return max(128, min(4096, tm))


def ffn_forward(x, w1, b1, w2, b2, *, tm=None):
    """x: [N, in_ch]; w1: [hidden, in_ch]; b1: [hidden]; w2: [out_ch, hidden]; b2: [out_ch].

    Returns [N, out_ch], matching the PyTorch module's eval-mode forward.
    tm (optional) is the lane-axis batch tile; must be a multiple of 128.
    """
    N, in_ch = x.shape
    hidden = w1.shape[0]
    out_ch = w2.shape[0]
    if tm is None:
        tm = _pick_tm(N)
    assert tm % 128 == 0, "tm must be a multiple of 128 (lane width)"

    # Transposed dataflow: batch on the lane axis.  No padding: Pallas masks
    # the partial last block; garbage lanes cannot contaminate valid ones.
    xt = jnp.asarray(x).T                      # (in_ch, N)
    b1c = jnp.asarray(b1).reshape(hidden, 1)
    b2c = jnp.asarray(b2).reshape(out_ch, 1)
    num_tiles = pl.cdiv(N, tm)

    out_t = pl.pallas_call(
        ffn_kernel,
        out_shape=jax.ShapeDtypeStruct((out_ch, N), x.dtype),
        grid_spec=pltpu.PrefetchScalarGridSpec(
            num_scalar_prefetch=0,
            grid=(num_tiles,),
            in_specs=[
                pl.BlockSpec((in_ch, tm), lambda i: (0, i)),        # x^T tile
                pl.BlockSpec((hidden, in_ch), lambda i: (0, 0)),    # W1 (full, tiny, resident)
                pl.BlockSpec((hidden, 1), lambda i: (0, 0)),        # b1 (full)
                pl.BlockSpec((out_ch, hidden), lambda i: (0, 0)),   # W2 (full, tiny, resident)
                pl.BlockSpec((out_ch, 1), lambda i: (0, 0)),        # b2 (full)
            ],
            out_specs=pl.BlockSpec((out_ch, tm), lambda i: (0, i)),
        ),
        compiler_params=pltpu.CompilerParams(
            dimension_semantics=("parallel",)),   # shards the grid across TCs on v7x
    )(xt, w1, b1c, w2, b2c)

    # Return in the module's [N, out_ch] layout (tiny array, cheap transpose).
    return out_t.T


def ffn_reference(x, w1, b1, w2, b2):
    h = jnp.tanh(x @ w1.T + b1)
    return h @ w2.T + b2


if __name__ == "__main__":
    # Shapes consistent with the module: FFN(in_ch=4, hidden_dim=32, out_ch=2).
    in_ch, hidden_dim, out_ch = 4, 32, 2
    # N deliberately NOT a multiple of the tile width: exercises the unpadded
    # partial-last-block path and (with auto tm=1024) a 2-step parallel grid.
    N = 2000

    key = jax.random.PRNGKey(0)
    kx, k1, k2, k3, k4 = jax.random.split(key, 5)

    x = jax.random.normal(kx, (N, in_ch), dtype=jnp.float32)

    # Deterministic parameter init (PyTorch Linear shapes: W [out, in], b [out]).
    bound1 = 1.0 / jnp.sqrt(in_ch)
    w1 = jax.random.uniform(k1, (hidden_dim, in_ch), jnp.float32, -bound1, bound1)
    b1 = jax.random.uniform(k2, (hidden_dim,), jnp.float32, -bound1, bound1)
    bound2 = 1.0 / jnp.sqrt(hidden_dim)
    w2 = jax.random.uniform(k3, (out_ch, hidden_dim), jnp.float32, -bound2, bound2)
    b2 = jax.random.uniform(k4, (out_ch,), jnp.float32, -bound2, bound2)

    out = ffn_forward(x, w1, b1, w2, b2)          # auto tm -> 1024, grid=(2,)
    out = jax.block_until_ready(out)

    ref = ffn_reference(x, w1, b1, w2, b2)
    assert out.shape == (N, out_ch)
    assert jnp.allclose(out, ref, atol=1e-5, rtol=1e-5), "mismatch vs reference"

    # Also exercise an explicit single-tile config (grid=(1,)) for coverage.
    out2 = jax.block_until_ready(ffn_forward(x, w1, b1, w2, b2, tm=2048))
    assert jnp.allclose(out2, ref, atol=1e-5, rtol=1e-5), "mismatch vs reference (tm=2048)"

    print("KERNEL_OK")
</pallas_src>

<mosaic_0001>
module attributes {stable_mosaic.version = 11 : i64} {
  func.func @ffn_kernel(%arg0: i32, %arg1: memref<4x1024xf32, #tpu.memory_space<vmem>>, %arg2: memref<32x4xf32, #tpu.memory_space<vmem>>, %arg3: memref<32x1xf32, #tpu.memory_space<vmem>>, %arg4: memref<2x32xf32, #tpu.memory_space<vmem>>, %arg5: memref<2x1xf32, #tpu.memory_space<vmem>>, %arg6: memref<2x1024xf32, #tpu.memory_space<vmem>>) attributes {dimension_semantics = [#tpu.dimension_semantics<parallel>], iteration_bounds = array<i64: 2>, scalar_prefetch = 0 : i64, scratch_operands = 0 : i64, tpu.core_type = #tpu.core_type<tc>, window_params = [{transform_indices = @transform_0, window_bounds = array<i64: 4, 1024>}, {pipeline_mode = #tpu.pipeline_mode<synchronous>, transform_indices = @transform_1, window_bounds = array<i64: 32, 4>}, {pipeline_mode = #tpu.pipeline_mode<synchronous>, transform_indices = @transform_2, window_bounds = array<i64: 32, 1>}, {pipeline_mode = #tpu.pipeline_mode<synchronous>, transform_indices = @transform_3, window_bounds = array<i64: 2, 32>}, {pipeline_mode = #tpu.pipeline_mode<synchronous>, transform_indices = @transform_4, window_bounds = array<i64: 2, 1>}, {transform_indices = @transform_5, window_bounds = array<i64: 2, 1024>}]} {
    %c0 = arith.constant 0 : index
    %c0_0 = arith.constant 0 : index
    %0 = vector.load %arg2[%c0, %c0_0] : memref<32x4xf32, #tpu.memory_space<vmem>>, vector<32x4xf32>
    %c0_1 = arith.constant 0 : index
    %c0_2 = arith.constant 0 : index
    %1 = vector.load %arg1[%c0_1, %c0_2] : memref<4x1024xf32, #tpu.memory_space<vmem>>, vector<4x1024xf32>
    %cst = arith.constant dense<0.000000e+00> : vector<32x1024xf32>
    %2 = tpu.matmul %0, %1, %cst {dimension_numbers = #tpu.dot_dimension_numbers<[1], [0], [0], [1], [0, 0, 1, 1], [], []>} : vector<32x4xf32>, vector<4x1024xf32>, vector<32x1024xf32> -> vector<32x1024xf32>
    %c0_3 = arith.constant 0 : index
    %c0_4 = arith.constant 0 : index
    %3 = vector.load %arg3[%c0_3, %c0_4] : memref<32x1xf32, #tpu.memory_space<vmem>>, vector<32x1xf32>
    %4 = vector.broadcast %3 : vector<32x1xf32> to vector<32x1024xf32>
    %5 = arith.addf %2, %4 : vector<32x1024xf32>
    %6 = math.tanh %5 : vector<32x1024xf32>
    %c0_5 = arith.constant 0 : index
    %c0_6 = arith.constant 0 : index
    %7 = vector.load %arg4[%c0_5, %c0_6] : memref<2x32xf32, #tpu.memory_space<vmem>>, vector<2x32xf32>
    %cst_7 = arith.constant dense<0.000000e+00> : vector<2x1024xf32>
    %8 = tpu.matmul %7, %6, %cst_7 {dimension_numbers = #tpu.dot_dimension_numbers<[1], [0], [0], [1], [0, 0, 1, 1], [], []>} : vector<2x32xf32>, vector<32x1024xf32>, vector<2x1024xf32> -> vector<2x1024xf32>
    %c0_8 = arith.constant 0 : index
    %c0_9 = arith.constant 0 : index
    %9 = vector.load %arg5[%c0_8, %c0_9] : memref<2x1xf32, #tpu.memory_space<vmem>>, vector<2x1xf32>
    %10 = vector.broadcast %9 : vector<2x1xf32> to vector<2x1024xf32>
    %11 = arith.addf %8, %10 : vector<2x1024xf32>
    %c0_10 = arith.constant 0 : index
    %c0_11 = arith.constant 0 : index
    %12 = vector.load %arg6[%c0_10, %c0_11] : memref<2x1024xf32, #tpu.memory_space<vmem>>, vector<2x1024xf32>
    tpu.vector_store %arg6[%c0_10, %c0_11], %11 {strides = array<i32>} : memref<2x1024xf32, #tpu.memory_space<vmem>>, vector<2x1024xf32>,
    return
  }
  func.func @transform_0(%arg0: i32) -> (i32, i32) {
    %c0_i32 = arith.constant 0 : i32
    %c0_i32_0 = arith.constant 0 : i32
    return %c0_i32, %arg0 : i32, i32
  }
  func.func @transform_1(%arg0: i32) -> (i32, i32) {
    %c0_i32 = arith.constant 0 : i32
    %c0_i32_0 = arith.constant 0 : i32
    %c0_i32_1 = arith.constant 0 : i32
    return %c0_i32, %c0_i32_0 : i32, i32
  }
  func.func @transform_2(%arg0: i32) -> (i32, i32) {
    %c0_i32 = arith.constant 0 : i32
    %c0_i32_0 = arith.constant 0 : i32
    %c0_i32_1 = arith.constant 0 : i32
    return %c0_i32, %c0_i32_0 : i32, i32
  }
  func.func @transform_3(%arg0: i32) -> (i32, i32) {
    %c0_i32 = arith.constant 0 : i32
    %c0_i32_0 = arith.constant 0 : i32
    %c0_i32_1 = arith.constant 0 : i32
    return %c0_i32, %c0_i32_0 : i32, i32
  }
  func.func @transform_4(%arg0: i32) -> (i32, i32) {
    %c0_i32 = arith.constant 0 : i32
    %c0_i32_0 = arith.constant 0 : i32
    %c0_i32_1 = arith.constant 0 : i32
    return %c0_i32, %c0_i32_0 : i32, i32
  }
  func.func @transform_5(%arg0: i32) -> (i32, i32) {
    %c0_i32 = arith.constant 0 : i32
    %c0_i32_0 = arith.constant 0 : i32
    return %c0_i32, %arg0 : i32, i32
  }
}

</mosaic_0001>

<llo_original>
// kernel: tpu_custom_call.1
$region0: #{tpu_custom_call.1}
  #allocation0 [shape = 'u32[]', space=smem, size = 0x4, offset = 0x4, fixed_abs, tag = 'smem constant byte address 0x4 - core index']
  #allocation1 [shape = 'u32[72,128]{1,0:T(1,128)}', space=vmem, size = 0x9000, scoped, tag = 'internal scratch']
  %s0 = inlined_call_operand.vmem [shape: f32[4,2000], index: 0, kind: input, shape index: {}]
  %s1 = inlined_call_operand.vmem [shape: f32[32,4], index: 1, kind: input, shape index: {}]
  %s2 = inlined_call_operand.vmem [shape: f32[32,1], index: 2, kind: input, shape index: {}]
  %s3 = inlined_call_operand.vmem [shape: f32[2,32], index: 3, kind: input, shape index: {}]
  %s4 = inlined_call_operand.vmem [shape: f32[2,1], index: 4, kind: input, shape index: {}]
  %s5 = inlined_call_operand.hbm [shape: f32[2,2000], index: 5, kind: output, shape index: {}]
  %s6 = sld [smem:[#allocation0]]
  $region53: #{tpu_custom_call.1} parent=0
    _
  %s8 = ssub.s32 1, %s6
  %s9 = scalar_select 0, %s8, %s6
  $region1: #{tpu_custom_call.1} parent=0
    #allocation2 [shape = 'u8[16384]{0}', space=vmem, size = 0x4000, scoped, tag = 'output window, operand 0']
    #allocation3 [shape = 's32[2]{0}', space=sflag, size = 0x8, scoped, tag = 'scoped memory for tpu_custom_call.1']
    %10 = vsyncpa [#allocation3], 0
    %s11 = scalar_lea.sflag [#allocation3], 1
    %12 = vsyncpa %s11, 0
    loop: start=0, step=1, limit=4
    $region2: #{tpu_custom_call.1} parent=1 // loop_pre_header
      _
    $region3: #{tpu_custom_call.1} parent=1 // loop_header
      %s14 = sphi 0, %s18
      %p15 = scmp.ge.s32.totalorder %s14, 4
      %s24 = sphi 0, %s26
      %s27 = sphi 0, %s24
      %s28 = sphi 0, %s27
      %s44 = sphi 0, %s28
      %s48 = sphi 0, %s48
      %s50 = sphi 0, %s48
      %s51 = sphi 0, %s50
      %s65 = sphi 0, %s51
      %s69 = sphi 0, %s69
      %s71 = sphi 0, %s69
      %s72 = sphi 0, %s71
      %s86 = sphi 0, %s72
      %s90 = sphi 0, %s90
      %s92 = sphi 0, %s90
      %s93 = sphi 0, %s92
      %s107 = sphi 0, %s93
      %s111 = sphi 0, %s111
      %s113 = sphi 0, %s111
      %s114 = sphi 0, %s113
      %s128 = sphi 0, %s114
      %s134 = sphi 0, %s136
      %s137 = sphi 0, %s134
      %s138 = sphi 0, %s137
      %s154 = sphi 0, %s138
    $region4: #{tpu_custom_call.1} parent=1 // loop_header_branch
      %17 = sbr.rel (%p15) target = $region8
    $region5: #{tpu_custom_call.1} parent=1 // loop_body
      %s19 = ssub.s32 %s14, 1
      %s20 = ssub.s32 %s14, 2
      %s21 = sadd.s32 %s14, 1
      %s22 = ssub.s32 %s14, %s21
      %p23 = scmp.eq.s32.totalorder %s22, 0
      %s25 = sadd.s32 %s24, 1
      %s26 = scalar_select %p23, %s24, %s25
      %p29 = pneg %p23
      %p30 = scmp.eq.s32.totalorder %s14, 1
      %p31 = por %p29, %p30
      %p32 = scmp.ne.s32.totalorder %s24, %s27
      %p33 = scmp.eq.s32.totalorder %s14, 0
      %p34 = por %p32, %p33
      %p35 = scmp.ne.s32.totalorder %s24, %s27
      %p36 = scmp.eq.s32.totalorder %s19, 1
      %p37 = por %p35, %p36
      %p38 = scmp.ne.s32.totalorder %s27, %s28
      %p39 = scmp.eq.s32.totalorder %s19, 0
      %p40 = por %p38, %p39
      %p41 = scmp.ne.s32.totalorder %s27, %s28
      %p42 = scmp.eq.s32.totalorder %s20, 1
      %p43 = por %p41, %p42
      %p45 = scmp.ne.s32.totalorder %s28, %s44
      %p46 = scmp.eq.s32.totalorder %s20, 0
      %p47 = por %p45, %p46
      %s49 = sadd.s32 %s48, 1
      %p52 = scmp.eq.s32.totalorder %s14, 1
      %p53 = scmp.ne.s32.totalorder %s48, %s50
      %p54 = scmp.eq.s32.totalorder %s14, 0
      %p55 = por %p53, %p54
      %p56 = scmp.ne.s32.totalorder %s48, %s50
      %p57 = scmp.eq.s32.totalorder %s19, 1
      %p58 = por %p56, %p57
      %p59 = scmp.ne.s32.totalorder %s50, %s51
      %p60 = scmp.eq.s32.totalorder %s19, 0
      %p61 = por %p59, %p60
      %p62 = scmp.ne.s32.totalorder %s50, %s51
      %p63 = scmp.eq.s32.totalorder %s20, 1
      %p64 = por %p62, %p63
      %p66 = scmp.ne.s32.totalorder %s51, %s65
      %p67 = scmp.eq.s32.totalorder %s20, 0
      %p68 = por %p66, %p67
      %s70 = sadd.s32 %s69, 1
      %p73 = scmp.eq.s32.totalorder %s14, 1
      %p74 = scmp.ne.s32.totalorder %s69, %s71
      %p75 = scmp.eq.s32.totalorder %s14, 0
      %p76 = por %p74, %p75
      %p77 = scmp.ne.s32.totalorder %s69, %s71
      %p78 = scmp.eq.s32.totalorder %s19, 1
      %p79 = por %p77, %p78
      %p80 = scmp.ne.s32.totalorder %s71, %s72
      %p81 = scmp.eq.s32.totalorder %s19, 0
      %p82 = por %p80, %p81
      %p83 = scmp.ne.s32.totalorder %s71, %s72
      %p84 = scmp.eq.s32.totalorder %s20, 1
      %p85 = por %p83, %p84
      %p87 = scmp.ne.s32.totalorder %s72, %s86
      %p88 = scmp.eq.s32.totalorder %s20, 0
      %p89 = por %p87, %p88
      %s91 = sadd.s32 %s90, 1
      %p94 = scmp.eq.s32.totalorder %s14, 1
      %p95 = scmp.ne.s32.totalorder %s90, %s92
      %p96 = scmp.eq.s32.totalorder %s14, 0
      %p97 = por %p95, %p96
      %p98 = scmp.ne.s32.totalorder %s90, %s92
      %p99 = scmp.eq.s32.totalorder %s19, 1
      %p100 = por %p98, %p99
      %p101 = scmp.ne.s32.totalorder %s92, %s93
      %p102 = scmp.eq.s32.totalorder %s19, 0
      %p103 = por %p101, %p102
      %p104 = scmp.ne.s32.totalorder %s92, %s93
      %p105 = scmp.eq.s32.totalorder %s20, 1
      %p106 = por %p104, %p105
      %p108 = scmp.ne.s32.totalorder %s93, %s107
      %p109 = scmp.eq.s32.totalorder %s20, 0
      %p110 = por %p108, %p109
      %s112 = sadd.s32 %s111, 1
      %p115 = scmp.eq.s32.totalorder %s14, 1
      %p116 = scmp.ne.s32.totalorder %s111, %s113
      %p117 = scmp.eq.s32.totalorder %s14, 0
      %p118 = por %p116, %p117
      %p119 = scmp.ne.s32.totalorder %s111, %s113
      %p120 = scmp.eq.s32.totalorder %s19, 1
      %p121 = por %p119, %p120
      %p122 = scmp.ne.s32.totalorder %s113, %s114
      %p123 = scmp.eq.s32.totalorder %s19, 0
      %p124 = por %p122, %p123
      %p125 = scmp.ne.s32.totalorder %s113, %s114
      %p126 = scmp.eq.s32.totalorder %s20, 1
      %p127 = por %p125, %p126
      %p129 = scmp.ne.s32.totalorder %s114, %s128
      %p130 = scmp.eq.s32.totalorder %s20, 0
      %p131 = por %p129, %p130
      %s132 = ssub.s32 %s14, %s21
      %p133 = scmp.eq.s32.totalorder %s132, 0
      %s135 = sadd.s32 %s134, 1
      %s136 = scalar_select %p133, %s134, %s135
      %p139 = pneg %p133
      %p140 = scmp.eq.s32.totalorder %s14, 1
      %p141 = por %p139, %p140
      %p142 = scmp.ne.s32.totalorder %s134, %s137
      %p143 = scmp.eq.s32.totalorder %s14, 0
      %p144 = por %p142, %p143
      %p145 = scmp.ne.s32.totalorder %s134, %s137
      %p146 = scmp.eq.s32.totalorder %s19, 1
      %p147 = por %p145, %p146
      %p148 = scmp.ne.s32.totalorder %s137, %s138
      %p149 = scmp.eq.s32.totalorder %s19, 0
      %p150 = por %p148, %p149
      %p151 = scmp.ne.s32.totalorder %s137, %s138
      %p152 = scmp.eq.s32.totalorder %s20, 1
      %p153 = por %p151, %p152
      %p155 = scmp.ne.s32.totalorder %s138, %s154
      %p156 = scmp.eq.s32.totalorder %s20, 0
      %p157 = por %p155, %p156
      %p158 = scmp.le.s32.totalorder 1, %s14
      %p159 = scmp.lt.s32.totalorder %s14, 3
      %p160 = pnand %p158, %p159
      %p161 = pneg %p160
      // Predicated region
      $region9: #{tpu_custom_call.1} parent=5 // pred_check
        _
      $region10: #{tpu_custom_call.1} parent=5 // pred_check_branch
        %163 = sbr.rel (%p160) target = $region12
      $region11: #{tpu_custom_call.1} parent=5 // pred_region
        %s164 = ssub.s32 %s14, 1
        // Predicated region
        $region13: #{tpu_custom_call.1} parent=11 // pred_check
          %p165 = pneg %p61
        $region14: #{tpu_custom_call.1} parent=11 // pred_check_branch
          %167 = sbr.rel (%p165) target = $region16
        $region15: #{tpu_custom_call.1} parent=11 // pred_region
          _
        $region16: #{tpu_custom_call.1} parent=11 // pred_fallthru
          _
        // Predicated region
        $region17: #{tpu_custom_call.1} parent=11 // pred_check
          %p168 = pneg %p82
        $region18: #{tpu_custom_call.1} parent=11 // pred_check_branch
          %170 = sbr.rel (%p168) target = $region20
        $region19: #{tpu_custom_call.1} parent=11 // pred_region
          _
        $region20: #{tpu_custom_call.1} parent=11 // pred_fallthru
          _
        // Predicated region
        $region21: #{tpu_custom_call.1} parent=11 // pred_check
          %p171 = pneg %p103
        $region22: #{tpu_custom_call.1} parent=11 // pred_check_branch
          %173 = sbr.rel (%p171) target = $region24
        $region23: #{tpu_custom_call.1} parent=11 // pred_region
          _
        $region24: #{tpu_custom_call.1} parent=11 // pred_fallthru
          _
        // Predicated region
        $region25: #{tpu_custom_call.1} parent=11 // pred_check
          %p174 = pneg %p124
        $region26: #{tpu_custom_call.1} parent=11 // pred_check_branch
          %176 = sbr.rel (%p174) target = $region28
        $region27: #{tpu_custom_call.1} parent=11 // pred_region
          _
        $region28: #{tpu_custom_call.1} parent=11 // pred_fallthru
          _
      $region12: #{tpu_custom_call.1} parent=5 // pred_fallthru
        _
      %p177 = scmp.lt.s32.totalorder %s14, 2
      // Predicated region
      $region29: #{tpu_custom_call.1} parent=5 // pred_check
        %p178 = pneg %p177
      $region30: #{tpu_custom_call.1} parent=5 // pred_check_branch
        %180 = sbr.rel (%p178) target = $region32
      $region31: #{tpu_custom_call.1} parent=5 // pred_region
        // Predicated region
        $region33: #{tpu_custom_call.1} parent=31 // pred_check
          %p181 = pneg %p34
        $region34: #{tpu_custom_call.1} parent=31 // pred_check_branch
          %183 = sbr.rel (%p181) target = $region36
        $region35: #{tpu_custom_call.1} parent=31 // pred_region
          %s184 = smul.u32 8, %s14
          %p185 = scmp.lt.s32.totalorder %s184, 15
          %s186 = scalar_select %p185, %s184, 15
          %s187 = smul.addr %s186, 4
          %s188 = scalar_lea.vmem %s0, %s187
          %s189 = smul.u32 8, %s14
        $region36: #{tpu_custom_call.1} parent=31 // pred_fallthru
          _
      $region32: #{tpu_custom_call.1} parent=5 // pred_fallthru
        _
      %p190 = scmp.le.s32.totalorder 1, %s14
      %p191 = scmp.lt.s32.totalorder %s14, 3
      %p192 = pnand %p190, %p191
      %p193 = pneg %p192
      // Predicated region
      $region37: #{tpu_custom_call.1} parent=5 // pred_check
        _
      $region38: #{tpu_custom_call.1} parent=5 // pred_check_branch
        %195 = sbr.rel (%p192) target = $region40
      $region39: #{tpu_custom_call.1} parent=5 // pred_region
        %s196 = ssub.s32 %s14, 1
        %s197 = smul.u32 8, %s19
        %p198 = scmp.lt.s32.totalorder %s197, 15
        %s199 = scalar_select %p198, %s197, 15
        %s200 = smul.addr %s199, 4
        %s201 = scalar_lea.vmem %s0, %s200
        %p202 = pneg %p40
        %p203 = pneg %p37
        %p204 = pneg %p61
        %p205 = pneg %p58
        %p206 = pneg %p82
        %p207 = pneg %p79
        %p208 = pneg %p103
        %p209 = pneg %p100
        %p210 = pneg %p124
        %p211 = pneg %p121
        %p212 = pneg %p150
        %p213 = pneg %p147
        %s214 = sand.u32 %s137, 1
        %s215 = scalar_lea.sflag [#allocation3], %s214
        %s216 = sand.u32 %s137, 1
        %s217 = smul.addr %s216, 16
        %s218 = scalar_lea.vmem [#allocation2], %s217
        %s219 = smul.u32 8, %s19
        %p220 = scmp.lt.s32.totalorder %s219, 15
        %s221 = scalar_select %p220, %s219, 15
        %s222 = smul.addr %s221, 4
        %s223 = scalar_lea.vmem %s0, %s222
        %s224 = smul.u32 8, %s19
        %s225 = smul.u32 8, %s19
        %v226 = vld [vmem:[%s1] sm:$0xff]
        %v227 = vld [vmem:[%s1 + $0x8] sm:$0xff]
        %v228 = vld [vmem:[%s1 + $0x10] sm:$0xff]
        %v229 = vld [vmem:[%s1 + $0x18] sm:$0xff]
        %v230 = vld [vmem:[%s223] sm:$0xff]
        %v231 = vld [vmem:[%s223 + $0x8] sm:$0xff]
        %v232 = vld [vmem:[%s223 + $0x10] sm:$0xff]
        %v233 = vld [vmem:[%s223 + $0x18] sm:$0xff]
        %v234 = vld [vmem:[%s2] sm:$0xff]
        %v235 = vld [vmem:[%s2 + $0x8] sm:$0xff]
        %v236 = vld [vmem:[%s2 + $0x10] sm:$0xff]
        %v237 = vld [vmem:[%s2 + $0x18] sm:$0xff]
        %239 = vset.pattern.permute.xlu0 0
        %240 = vperm.xlu0 %239, %v234
        %v241 = vpop.permute.xlu0 %240
        %244 = vset.pattern.permute.xlu0 0
        %245 = vperm.xlu0 %244, %v235
        %v246 = vpop.permute.xlu0 %245
        %249 = vset.pattern.permute.xlu0 0
        %250 = vperm.xlu0 %249, %v236
        %v251 = vpop.permute.xlu0 %250
        %254 = vset.pattern.permute.xlu0 0
        %255 = vperm.xlu0 %254, %v237
        %v256 = vpop.permute.xlu0 %255
        %262 = vst [vmem:[#allocation1] ss:$2 sm:$0xff] %v230
        %s263 = scalar_lea.vmem [#allocation1], 16
        %264 = vst [vmem:[%s263] ss:$2 sm:$0xff] %v231
        %s265 = scalar_lea.vmem [#allocation1], 32
        %266 = vst [vmem:[%s265] ss:$2 sm:$0xff] %v232
        %s267 = scalar_lea.vmem [#allocation1], 48
        %268 = vst [vmem:[%s267] ss:$2 sm:$0xff] %v233
        %v269 = vld.sshfl [vmem:[#allocation1] sm:$0xff pattern:$0x75316420]
        %v270 = vld.sshfl [vmem:[#allocation1 + $0x8] sm:$0xff pattern:$0x75316420]
        %v271 = vld.sshfl [vmem:[#allocation1 + $0x10] sm:$0xff pattern:$0x75316420]
        %v272 = vld.sshfl [vmem:[#allocation1 + $0x18] sm:$0xff pattern:$0x75316420]
        %v273 = vld.sshfl [vmem:[#allocation1 + $0x20] sm:$0xff pattern:$0x75316420]
        %v274 = vld.sshfl [vmem:[#allocation1 + $0x28] sm:$0xff pattern:$0x75316420]
        %v275 = vld.sshfl [vmem:[#allocation1 + $0x30] sm:$0xff pattern:$0x75316420]
        %v276 = vld.sshfl [vmem:[#allocation1 + $0x38] sm:$0xff pattern:$0x75316420]
        %vm277 = vcmask 31744
        %v279 = vsel %vm277, %v226, 0
        %v282 = vsel %vm277, %v227, 0
        %v285 = vsel %vm277, %v228, 0
        %v288 = vsel %vm277, %v229, 0
        %vm290 = vcmask 1043456
        %v291 = vsel %vm290, %v269, 0
        %v293 = vsel %vm290, %v270, 0
        %v295 = vsel %vm290, %v271, 0
        %v297 = vsel %vm290, %v272, 0
        %v299 = vsel %vm290, %v273, 0
        %v301 = vsel %vm290, %v274, 0
        %v303 = vsel %vm290, %v275, 0
        %v305 = vsel %vm290, %v276, 0
        %307 = vmatpush.msra.mxu0 0.0
        %308 = vmatpush.msra.mxu0 0.0
        %309 = vmatpush.msra.mxu0 0.0
        %310 = vmatpush.msra.mxu0 0.0
        %311 = vmatpush.msra.mxu0 0.0
        %312 = vmatpush.msra.mxu0 0.0
        %313 = vmatpush.msra.mxu0 0.0
        %314 = vmatpush.msra.mxu0 0.0
        %315 = vmatpush.msra.mxu0 0.0
        %316 = vmatpush.msra.mxu0 0.0
        %317 = vmatpush.msra.mxu0 0.0
        %318 = vmatpush.msra.mxu0 0.0
        %319 = vmatpush.msra.mxu0 0.0
        %320 = vmatpush.msra.mxu0 0.0
        %321 = vmatpush.msra.mxu0 0.0
        %322 = vmatpush.msra.mxu0 %v291
        %323 = vmatmul.f32.gmra.mxu0 %v279
        %v324 = vpop.f32.mrf.mxu0
        %v325 = vadd.f32 %v241, %v324
        %326 = vmatmul.f32.gmra.mxu0 %v282
        %v327 = vpop.f32.mrf.mxu0
        %v328 = vadd.f32 %v246, %v327
        %329 = vmatmul.f32.gmra.mxu0 %v285
        %v330 = vpop.f32.mrf.mxu0
        %v331 = vadd.f32 %v251, %v330
        %332 = vmatmul.f32.gmra.mxu0 %v288
        %v333 = vpop.f32.mrf.mxu0
        %v334 = vadd.f32 %v256, %v333
        %335 = vdwg.mxu0
        %336 = vmatpush.msra.mxu0 0.0
        %337 = vmatpush.msra.mxu0 0.0
        %338 = vmatpush.msra.mxu0 0.0
        %339 = vmatpush.msra.mxu0 0.0
        %340 = vmatpush.msra.mxu0 0.0
        %341 = vmatpush.msra.mxu0 0.0
        %342 = vmatpush.msra.mxu0 0.0
        %343 = vmatpush.msra.mxu0 0.0
        %344 = vmatpush.msra.mxu0 0.0
        %345 = vmatpush.msra.mxu0 0.0
        %346 = vmatpush.msra.mxu0 0.0
        %347 = vmatpush.msra.mxu0 0.0
        %348 = vmatpush.msra.mxu0 0.0
        %349 = vmatpush.msra.mxu0 0.0
        %350 = vmatpush.msra.mxu0 0.0
        %351 = vmatpush.msra.mxu0 %v293
        %352 = vmatmul.f32.gmra.mxu0 %v279
        %v353 = vpop.f32.mrf.mxu0
        %v354 = vadd.f32 %v241, %v353
        %355 = vmatmul.f32.gmra.mxu0 %v282
        %v356 = vpop.f32.mrf.mxu0
        %v357 = vadd.f32 %v246, %v356
        %358 = vmatmul.f32.gmra.mxu0 %v285
        %v359 = vpop.f32.mrf.mxu0
        %v360 = vadd.f32 %v251, %v359
        %361 = vmatmul.f32.gmra.mxu0 %v288
        %v362 = vpop.f32.mrf.mxu0
        %v363 = vadd.f32 %v256, %v362
        %364 = vdwg.mxu0
        %365 = vmatpush.msra.mxu0 0.0
        %366 = vmatpush.msra.mxu0 0.0
        %367 = vmatpush.msra.mxu0 0.0
        %368 = vmatpush.msra.mxu0 0.0
        %369 = vmatpush.msra.mxu0 0.0
        %370 = vmatpush.msra.mxu0 0.0
        %371 = vmatpush.msra.mxu0 0.0
        %372 = vmatpush.msra.mxu0 0.0
        %373 = vmatpush.msra.mxu0 0.0
        %374 = vmatpush.msra.mxu0 0.0
        %375 = vmatpush.msra.mxu0 0.0
        %376 = vmatpush.msra.mxu0 0.0
        %377 = vmatpush.msra.mxu0 0.0
        %378 = vmatpush.msra.mxu0 0.0
        %379 = vmatpush.msra.mxu0 0.0
        %380 = vmatpush.msra.mxu0 %v295
        %381 = vmatmul.f32.gmra.mxu0 %v279
        %v382 = vpop.f32.mrf.mxu0
        %v383 = vadd.f32 %v241, %v382
        %384 = vmatmul.f32.gmra.mxu0 %v282
        %v385 = vpop.f32.mrf.mxu0
        %v386 = vadd.f32 %v246, %v385
        %387 = vmatmul.f32.gmra.mxu0 %v285
        %v388 = vpop.f32.mrf.mxu0
        %v389 = vadd.f32 %v251, %v388
        %390 = vmatmul.f32.gmra.mxu0 %v288
        %v391 = vpop.f32.mrf.mxu0
        %v392 = vadd.f32 %v256, %v391
        %393 = vdwg.mxu0
        %394 = vmatpush.msra.mxu0 0.0
        %395 = vmatpush.msra.mxu0 0.0
        %396 = vmatpush.msra.mxu0 0.0
        %397 = vmatpush.msra.mxu0 0.0
        %398 = vmatpush.msra.mxu0 0.0
        %399 = vmatpush.msra.mxu0 0.0
        %400 = vmatpush.msra.mxu0 0.0
        %401 = vmatpush.msra.mxu0 0.0
        %402 = vmatpush.msra.mxu0 0.0
        %403 = vmatpush.msra.mxu0 0.0
        %404 = vmatpush.msra.mxu0 0.0
        %405 = vmatpush.msra.mxu0 0.0
        %406 = vmatpush.msra.mxu0 0.0
        %407 = vmatpush.msra.mxu0 0.0
        %408 = vmatpush.msra.mxu0 0.0
        %409 = vmatpush.msra.mxu0 %v297
        %410 = vmatmul.f32.gmra.mxu0 %v279
        %v411 = vpop.f32.mrf.mxu0
        %v412 = vadd.f32 %v241, %v411
        %413 = vmatmul.f32.gmra.mxu0 %v282
        %v414 = vpop.f32.mrf.mxu0
        %v415 = vadd.f32 %v246, %v414
        %416 = vmatmul.f32.gmra.mxu0 %v285
        %v417 = vpop.f32.mrf.mxu0
        %v418 = vadd.f32 %v251, %v417
        %419 = vmatmul.f32.gmra.mxu0 %v288
        %v420 = vpop.f32.mrf.mxu0
        %v421 = vadd.f32 %v256, %v420
        %422 = vdwg.mxu0
        %423 = vmatpush.msra.mxu0 0.0
        %424 = vmatpush.msra.mxu0 0.0
        %425 = vmatpush.msra.mxu0 0.0
        %426 = vmatpush.msra.mxu0 0.0
        %427 = vmatpush.msra.mxu0 0.0
        %428 = vmatpush.msra.mxu0 0.0
        %429 = vmatpush.msra.mxu0 0.0
        %430 = vmatpush.msra.mxu0 0.0
        %431 = vmatpush.msra.mxu0 0.0
        %432 = vmatpush.msra.mxu0 0.0
        %433 = vmatpush.msra.mxu0 0.0
        %434 = vmatpush.msra.mxu0 0.0
        %435 = vmatpush.msra.mxu0 0.0
        %436 = vmatpush.msra.mxu0 0.0
        %437 = vmatpush.msra.mxu0 0.0
        %438 = vmatpush.msra.mxu0 %v299
        %439 = vmatmul.f32.gmra.mxu0 %v279
        %v440 = vpop.f32.mrf.mxu0
        %v441 = vadd.f32 %v241, %v440
        %442 = vmatmul.f32.gmra.mxu0 %v282
        %v443 = vpop.f32.mrf.mxu0
        %v444 = vadd.f32 %v246, %v443
        %445 = vmatmul.f32.gmra.mxu0 %v285
        %v446 = vpop.f32.mrf.mxu0
        %v447 = vadd.f32 %v251, %v446
        %448 = vmatmul.f32.gmra.mxu0 %v288
        %v449 = vpop.f32.mrf.mxu0
        %v450 = vadd.f32 %v256, %v449
        %451 = vdwg.mxu0
        %452 = vmatpush.msra.mxu0 0.0
        %453 = vmatpush.msra.mxu0 0.0
        %454 = vmatpush.msra.mxu0 0.0
        %455 = vmatpush.msra.mxu0 0.0
        %456 = vmatpush.msra.mxu0 0.0
        %457 = vmatpush.msra.mxu0 0.0
        %458 = vmatpush.msra.mxu0 0.0
        %459 = vmatpush.msra.mxu0 0.0
        %460 = vmatpush.msra.mxu0 0.0
        %461 = vmatpush.msra.mxu0 0.0
        %462 = vmatpush.msra.mxu0 0.0
        %463 = vmatpush.msra.mxu0 0.0
        %464 = vmatpush.msra.mxu0 0.0
        %465 = vmatpush.msra.mxu0 0.0
        %466 = vmatpush.msra.mxu0 0.0
        %467 = vmatpush.msra.mxu0 %v301
        %468 = vmatmul.f32.gmra.mxu0 %v279
        %v469 = vpop.f32.mrf.mxu0
        %v470 = vadd.f32 %v241, %v469
        %471 = vmatmul.f32.gmra.mxu0 %v282
        %v472 = vpop.f32.mrf.mxu0
        %v473 = vadd.f32 %v246, %v472
        %474 = vmatmul.f32.gmra.mxu0 %v285
        %v475 = vpop.f32.mrf.mxu0
        %v476 = vadd.f32 %v251, %v475
        %477 = vmatmul.f32.gmra.mxu0 %v288
        %v478 = vpop.f32.mrf.mxu0
        %v479 = vadd.f32 %v256, %v478
        %480 = vdwg.mxu0
        %481 = vmatpush.msra.mxu0 0.0
        %482 = vmatpush.msra.mxu0 0.0
        %483 = vmatpush.msra.mxu0 0.0
        %484 = vmatpush.msra.mxu0 0.0
        %485 = vmatpush.msra.mxu0 0.0
        %486 = vmatpush.msra.mxu0 0.0
        %487 = vmatpush.msra.mxu0 0.0
        %488 = vmatpush.msra.mxu0 0.0
        %489 = vmatpush.msra.mxu0 0.0
        %490 = vmatpush.msra.mxu0 0.0
        %491 = vmatpush.msra.mxu0 0.0
        %492 = vmatpush.msra.mxu0 0.0
        %493 = vmatpush.msra.mxu0 0.0
        %494 = vmatpush.msra.mxu0 0.0
        %495 = vmatpush.msra.mxu0 0.0
        %496 = vmatpush.msra.mxu0 %v303
        %497 = vmatmul.f32.gmra.mxu0 %v279
        %v498 = vpop.f32.mrf.mxu0
        %v499 = vadd.f32 %v241, %v498
        %500 = vmatmul.f32.gmra.mxu0 %v282
        %v501 = vpop.f32.mrf.mxu0
        %v502 = vadd.f32 %v246, %v501
        %503 = vmatmul.f32.gmra.mxu0 %v285
        %v504 = vpop.f32.mrf.mxu0
        %v505 = vadd.f32 %v251, %v504
        %506 = vmatmul.f32.gmra.mxu0 %v288
        %v507 = vpop.f32.mrf.mxu0
        %v508 = vadd.f32 %v256, %v507
        %509 = vdwg.mxu0
        %510 = vmatpush.msra.mxu0 0.0
        %511 = vmatpush.msra.mxu0 0.0
        %512 = vmatpush.msra.mxu0 0.0
        %513 = vmatpush.msra.mxu0 0.0
        %514 = vmatpush.msra.mxu0 0.0
        %515 = vmatpush.msra.mxu0 0.0
        %516 = vmatpush.msra.mxu0 0.0
        %517 = vmatpush.msra.mxu0 0.0
        %518 = vmatpush.msra.mxu0 0.0
        %519 = vmatpush.msra.mxu0 0.0
        %520 = vmatpush.msra.mxu0 0.0
        %521 = vmatpush.msra.mxu0 0.0
        %522 = vmatpush.msra.mxu0 0.0
        %523 = vmatpush.msra.mxu0 0.0
        %524 = vmatpush.msra.mxu0 0.0
        %525 = vmatpush.msra.mxu0 %v305
        %526 = vmatmul.f32.gmra.mxu0 %v279
        %v527 = vpop.f32.mrf.mxu0
        %v528 = vadd.f32 %v241, %v527
        %529 = vmatmul.f32.gmra.mxu0 %v282
        %v530 = vpop.f32.mrf.mxu0
        %v531 = vadd.f32 %v246, %v530
        %532 = vmatmul.f32.gmra.mxu0 %v285
        %v533 = vpop.f32.mrf.mxu0
        %v534 = vadd.f32 %v251, %v533
        %535 = vmatmul.f32.gmra.mxu0 %v288
        %v536 = vpop.f32.mrf.mxu0
        %v537 = vadd.f32 %v256, %v536
        %538 = vdwg.mxu0
        %v539 = vtanh.pop %v325
        %v540 = vtanh.pop %v354
        %v541 = vtanh.pop %v383
        %v542 = vtanh.pop %v412
        %v543 = vtanh.pop %v441
        %v544 = vtanh.pop %v470
        %v545 = vtanh.pop %v499
        %v546 = vtanh.pop %v528
        %v547 = vtanh.pop %v328
        %v548 = vtanh.pop %v357
        %v549 = vtanh.pop %v386
        %v550 = vtanh.pop %v415
        %v551 = vtanh.pop %v444
        %v552 = vtanh.pop %v473
        %v553 = vtanh.pop %v502
        %v554 = vtanh.pop %v531
        %v555 = vtanh.pop %v331
        %v556 = vtanh.pop %v360
        %v557 = vtanh.pop %v389
        %v558 = vtanh.pop %v418
        %v559 = vtanh.pop %v447
        %v560 = vtanh.pop %v476
        %v561 = vtanh.pop %v505
        %v562 = vtanh.pop %v534
        %v563 = vtanh.pop %v334
        %v564 = vtanh.pop %v363
        %v565 = vtanh.pop %v392
        %v566 = vtanh.pop %v421
        %v567 = vtanh.pop %v450
        %v568 = vtanh.pop %v479
        %v569 = vtanh.pop %v508
        %v570 = vtanh.pop %v537
        %v571 = vld [vmem:[%s3] sm:$0x3]
        %v572 = vld [vmem:[%s4] sm:$0x3]
        %574 = vset.pattern.permute.xlu0 0
        %575 = vperm.xlu0 %574, %v572
        %v576 = vpop.permute.xlu0 %575
        %vm578 = vcmask 261120
        %v580 = vsel %vm578, %v571, 0
        %582 = vmatpush.msra.mxu0 0.0
        %583 = vmatpush.msra.mxu0 0.0
        %584 = vmatpush.msra.mxu0 0.0
        %585 = vmatpush.msra.mxu0 0.0
        %586 = vmatpush.msra.mxu0 0.0
        %587 = vmatpush.msra.mxu0 0.0
        %588 = vmatpush.msra.mxu0 0.0
        %589 = vmatpush.msra.mxu0 0.0
        %590 = vmatpush.msra.mxu0 0.0
        %591 = vmatpush.msra.mxu0 0.0
        %592 = vmatpush.msra.mxu0 0.0
        %593 = vmatpush.msra.mxu0 0.0
        %594 = vmatpush.msra.mxu0 %v563
        %595 = vmatpush.msra.mxu0 %v555
        %596 = vmatpush.msra.mxu0 %v547
        %597 = vmatpush.msra.mxu0 %v539
        %598 = vmatmul.f32.gmra.mxu0 %v580
        %v599 = vpop.f32.mrf.mxu0
        %v600 = vadd.f32 %v576, %v599
        %601 = vdwg.mxu0
        %602 = vmatpush.msra.mxu0 0.0
        %603 = vmatpush.msra.mxu0 0.0
        %604 = vmatpush.msra.mxu0 0.0
        %605 = vmatpush.msra.mxu0 0.0
        %606 = vmatpush.msra.mxu0 0.0
        %607 = vmatpush.msra.mxu0 0.0
        %608 = vmatpush.msra.mxu0 0.0
        %609 = vmatpush.msra.mxu0 0.0
        %610 = vmatpush.msra.mxu0 0.0
        %611 = vmatpush.msra.mxu0 0.0
        %612 = vmatpush.msra.mxu0 0.0
        %613 = vmatpush.msra.mxu0 0.0
        %614 = vmatpush.msra.mxu0 %v564
        %615 = vmatpush.msra.mxu0 %v556
        %616 = vmatpush.msra.mxu0 %v548
        %617 = vmatpush.msra.mxu0 %v540
        %618 = vmatmul.f32.gmra.mxu0 %v580
        %v619 = vpop.f32.mrf.mxu0
        %v620 = vadd.f32 %v576, %v619
        %621 = vdwg.mxu0
        %622 = vmatpush.msra.mxu0 0.0
        %623 = vmatpush.msra.mxu0 0.0
        %624 = vmatpush.msra.mxu0 0.0
        %625 = vmatpush.msra.mxu0 0.0
        %626 = vmatpush.msra.mxu0 0.0
        %627 = vmatpush.msra.mxu0 0.0
        %628 = vmatpush.msra.mxu0 0.0
        %629 = vmatpush.msra.mxu0 0.0
        %630 = vmatpush.msra.mxu0 0.0
        %631 = vmatpush.msra.mxu0 0.0
        %632 = vmatpush.msra.mxu0 0.0
        %633 = vmatpush.msra.mxu0 0.0
        %634 = vmatpush.msra.mxu0 %v565
        %635 = vmatpush.msra.mxu0 %v557
        %636 = vmatpush.msra.mxu0 %v549
        %637 = vmatpush.msra.mxu0 %v541
        %638 = vmatmul.f32.gmra.mxu0 %v580
        %v639 = vpop.f32.mrf.mxu0
        %v640 = vadd.f32 %v576, %v639
        %641 = vdwg.mxu0
        %642 = vmatpush.msra.mxu0 0.0
        %643 = vmatpush.msra.mxu0 0.0
        %644 = vmatpush.msra.mxu0 0.0
        %645 = vmatpush.msra.mxu0 0.0
        %646 = vmatpush.msra.mxu0 0.0
        %647 = vmatpush.msra.mxu0 0.0
        %648 = vmatpush.msra.mxu0 0.0
        %649 = vmatpush.msra.mxu0 0.0
        %650 = vmatpush.msra.mxu0 0.0
        %651 = vmatpush.msra.mxu0 0.0
        %652 = vmatpush.msra.mxu0 0.0
        %653 = vmatpush.msra.mxu0 0.0
        %654 = vmatpush.msra.mxu0 %v566
        %655 = vmatpush.msra.mxu0 %v558
        %656 = vmatpush.msra.mxu0 %v550
        %657 = vmatpush.msra.mxu0 %v542
        %658 = vmatmul.f32.gmra.mxu0 %v580
        %v659 = vpop.f32.mrf.mxu0
        %v660 = vadd.f32 %v576, %v659
        %661 = vdwg.mxu0
        %662 = vmatpush.msra.mxu0 0.0
        %663 = vmatpush.msra.mxu0 0.0
        %664 = vmatpush.msra.mxu0 0.0
        %665 = vmatpush.msra.mxu0 0.0
        %666 = vmatpush.msra.mxu0 0.0
        %667 = vmatpush.msra.mxu0 0.0
        %668 = vmatpush.msra.mxu0 0.0
        %669 = vmatpush.msra.mxu0 0.0
        %670 = vmatpush.msra.mxu0 0.0
        %671 = vmatpush.msra.mxu0 0.0
        %672 = vmatpush.msra.mxu0 0.0
        %673 = vmatpush.msra.mxu0 0.0
        %674 = vmatpush.msra.mxu0 %v567
        %675 = vmatpush.msra.mxu0 %v559
        %676 = vmatpush.msra.mxu0 %v551
        %677 = vmatpush.msra.mxu0 %v543
        %678 = vmatmul.f32.gmra.mxu0 %v580
        %v679 = vpop.f32.mrf.mxu0
        %v680 = vadd.f32 %v576, %v679
        %681 = vdwg.mxu0
        %682 = vmatpush.msra.mxu0 0.0
        %683 = vmatpush.msra.mxu0 0.0
        %684 = vmatpush.msra.mxu0 0.0
        %685 = vmatpush.msra.mxu0 0.0
        %686 = vmatpush.msra.mxu0 0.0
        %687 = vmatpush.msra.mxu0 0.0
        %688 = vmatpush.msra.mxu0 0.0
        %689 = vmatpush.msra.mxu0 0.0
        %690 = vmatpush.msra.mxu0 0.0
        %691 = vmatpush.msra.mxu0 0.0
        %692 = vmatpush.msra.mxu0 0.0
        %693 = vmatpush.msra.mxu0 0.0
        %694 = vmatpush.msra.mxu0 %v568
        %695 = vmatpush.msra.mxu0 %v560
        %696 = vmatpush.msra.mxu0 %v552
        %697 = vmatpush.msra.mxu0 %v544
        %698 = vmatmul.f32.gmra.mxu0 %v580
        %v699 = vpop.f32.mrf.mxu0
        %v700 = vadd.f32 %v576, %v699
        %701 = vdwg.mxu0
        %702 = vmatpush.msra.mxu0 0.0
        %703 = vmatpush.msra.mxu0 0.0
        %704 = vmatpush.msra.mxu0 0.0
        %705 = vmatpush.msra.mxu0 0.0
        %706 = vmatpush.msra.mxu0 0.0
        %707 = vmatpush.msra.mxu0 0.0
        %708 = vmatpush.msra.mxu0 0.0
        %709 = vmatpush.msra.mxu0 0.0
        %710 = vmatpush.msra.mxu0 0.0
        %711 = vmatpush.msra.mxu0 0.0
        %712 = vmatpush.msra.mxu0 0.0
        %713 = vmatpush.msra.mxu0 0.0
        %714 = vmatpush.msra.mxu0 %v569
        %715 = vmatpush.msra.mxu0 %v561
        %716 = vmatpush.msra.mxu0 %v553
        %717 = vmatpush.msra.mxu0 %v545
        %718 = vmatmul.f32.gmra.mxu0 %v580
        %v719 = vpop.f32.mrf.mxu0
        %v720 = vadd.f32 %v576, %v719
        %721 = vdwg.mxu0
        %722 = vmatpush.msra.mxu0 0.0
        %723 = vmatpush.msra.mxu0 0.0
        %724 = vmatpush.msra.mxu0 0.0
        %725 = vmatpush.msra.mxu0 0.0
        %726 = vmatpush.msra.mxu0 0.0
        %727 = vmatpush.msra.mxu0 0.0
        %728 = vmatpush.msra.mxu0 0.0
        %729 = vmatpush.msra.mxu0 0.0
        %730 = vmatpush.msra.mxu0 0.0
        %731 = vmatpush.msra.mxu0 0.0
        %732 = vmatpush.msra.mxu0 0.0
        %733 = vmatpush.msra.mxu0 0.0
        %734 = vmatpush.msra.mxu0 %v570
        %735 = vmatpush.msra.mxu0 %v562
        %736 = vmatpush.msra.mxu0 %v554
        %737 = vmatpush.msra.mxu0 %v546
        %738 = vmatmul.f32.gmra.mxu0 %v580
        %v739 = vpop.f32.mrf.mxu0
        %v740 = vadd.f32 %v576, %v739
        %741 = vdwg.mxu0
        %v750 = vrot.slane %v620, 6
        %v751 = vrot.slane %v640, 4
        %v752 = vrot.slane %v660, 2
        %v753 = vrot.slane %v700, 6
        %v754 = vrot.slane %v720, 4
        %v755 = vrot.slane %v740, 2
        %vm756 = vcmask 1041408
        %v757 = vsel %vm756, %v600, %v750
        %vm758 = vcmask 1045508
        %v759 = vsel %vm758, %v751, %v752
        %v760 = vsel %vm290, %v757, %v759
        %v761 = vsel %vm756, %v680, %v753
        %v762 = vsel %vm758, %v754, %v755
        %v763 = vsel %vm290, %v761, %v762
        %766 = vst [vmem:[%s218] sm:$0xff] %v760
        %767 = vst [vmem:[%s218 + $0x8] sm:$0xff] %v763
        %s768 = sand.u32 %s137, 1
        %s769 = scalar_lea.sflag [#allocation3], %s768
        %s770 = sand.u32 %s137, 1
        %s771 = smul.addr %s770, 16
        %s772 = scalar_lea.vmem [#allocation2], %s771
        // Predicated region
        $region41: #{tpu_custom_call.1} parent=39 // pred_check
          %p773 = pneg %p147
        $region42: #{tpu_custom_call.1} parent=39 // pred_check_branch
          %775 = sbr.rel (%p773) target = $region44
        $region43: #{tpu_custom_call.1} parent=39 // pred_region
          %s776 = smul.u32 8, %s19
          %778 = vsyncadd %s769, 0
          %s779 = smul.addr %s776, 2
          %s780 = scalar_lea.hbm %s5, %s779
          %s782 = sshll.u32 %s772, 4
          %s783 = int_to_ptr.vmem [resolvable:$true] %s782
          %s784 = sshll.u32 %s780, 4
          %s785 = int_to_ptr.hbm [resolvable:$true] %s784
          %787 = dma.vmem_to_hbm [thread:$0]  %s783, 256, %s785, %s769
        $region44: #{tpu_custom_call.1} parent=39 // pred_fallthru
          _
      $region40: #{tpu_custom_call.1} parent=5 // pred_fallthru
        _
      %p788 = scmp.le.s32.totalorder 2, %s14
      // Predicated region
      $region45: #{tpu_custom_call.1} parent=5 // pred_check
        %p789 = pneg %p788
      $region46: #{tpu_custom_call.1} parent=5 // pred_check_branch
        %791 = sbr.rel (%p789) target = $region48
      $region47: #{tpu_custom_call.1} parent=5 // pred_region
        %s792 = ssub.s32 %s14, 2
        // Predicated region
        $region49: #{tpu_custom_call.1} parent=47 // pred_check
          %p793 = pneg %p153
        $region50: #{tpu_custom_call.1} parent=47 // pred_check_branch
          %795 = sbr.rel (%p793) target = $region52
        $region51: #{tpu_custom_call.1} parent=47 // pred_region
          %s796 = sand.u32 %s138, 1
          %s797 = scalar_lea.sflag [#allocation3], %s796
          %s798 = sand.u32 %s138, 1
          %s799 = smul.addr %s798, 16
          %s800 = scalar_lea.vmem [#allocation2], %s799
          %802 = dma.done %s797, 256
        $region52: #{tpu_custom_call.1} parent=47 // pred_fallthru
          _
      $region48: #{tpu_custom_call.1} parent=5 // pred_fallthru
        _
    $region6: #{tpu_custom_call.1} parent=1 // loop_footer
      %s18 = sadd.s32 1, %s14
    $region7: #{tpu_custom_call.1} parent=1 // loop_footer_branch
      %13 = sbr.rel target = $region3
    $region8: #{tpu_custom_call.1} parent=1 // loop_exit
      _
    %803 = vsyncpa [#allocation3], 1
    %s804 = scalar_lea.sflag [#allocation3], 1
    %805 = vsyncpa %s804, 1

</llo_original>
